<compile_context>
chip_gen: v7x
topology: tpu7x:2x2x1
jax: 0.10.0
libtpu: 0.0.40
codegen_flags: <defaults>
</compile_context>

<pallas_src>
import functools

import jax
import jax.numpy as jnp
from jax.experimental import pallas as pl
from jax.experimental.pallas import tpu as pltpu


_NEG_BIG = -1.0e30  # finite "-inf" used to mask padded vocab columns


def _round_up(a, m):
    return (a + m - 1) // m * m


# Per-generation VMEM budget: physical capacity minus headroom for compiler scratch.
try:  # trace-time hardware query; fall back when no TPU info is available
    _VMEM_CAP = int(pltpu.get_tpu_info().vmem_capacity_bytes)
except Exception:  # pragma: no cover
    _VMEM_CAP = 128 * 1024 * 1024
_VMEM_LIMIT = max(32 * 1024 * 1024, min(_VMEM_CAP - 16 * 1024 * 1024, 110 * 1024 * 1024))

# Row tile: v6e weight-reuse roofline wants ~700+ rows; v7x (64 MiB VMEM/TC) uses 512.
_DEFAULT_TM = 512 if _VMEM_CAP <= 64 * 1024 * 1024 else 768


def _proj_lse_kernel(x_ref, w_ref, b_ref, logits_ref, lse_ref, m_ref, l_ref):
    # x_ref: (tm, D) bf16   w_ref: (D, tn) bf16   b_ref: (1, tn) f32
    # logits_ref: (tm, tn) f32 (written every step, lane-dense, pipelined)
    # lse_ref: (tm, 1) f32 (resident over vocab axis; written at last vocab step)
    # m_ref, l_ref: (tm, 1) f32 online-logsumexp scratch
    j = pl.program_id(1)
    nj = pl.num_programs(1)

    @pl.when(j == 0)
    def _():
        m_ref[...] = jnp.full_like(m_ref, -jnp.inf)
        l_ref[...] = jnp.zeros_like(l_ref)

    # bf16 MXU matmul with f32 accumulation; epilogue math stays in f32 (v5e-safe).
    logits = jnp.dot(x_ref[...], w_ref[...], preferred_element_type=jnp.float32)
    logits = logits + b_ref[...]
    logits_ref[...] = logits

    # Online (running) max / sum-of-exp over the streamed vocab axis.
    # NOTE(v5e): for small d_model the exp stream can become EUP-bound; prefer growing tm
    # (amortizes epilogue/grid overhead) over growing tn in that regime.
    m_prev = m_ref[...]
    m_new = jnp.maximum(m_prev, jnp.max(logits, axis=-1, keepdims=True))
    l_ref[...] = l_ref[...] * jnp.exp(m_prev - m_new) + jnp.sum(
        jnp.exp(logits - m_new), axis=-1, keepdims=True
    )
    m_ref[...] = m_new

    @pl.when(j == nj - 1)
    def _():
        lse_ref[...] = m_ref[...] + jnp.log(l_ref[...])


def _normalize_kernel(logits_ref, lse_ref, o_ref):
    # log_softmax = logits - logsumexp, elementwise, lane-dense tiles.
    o_ref[...] = logits_ref[...] - lse_ref[...]


def prepare_projection_params(w, b, *, tn=512):
    """One-time weight prep (call OUTSIDE the per-step hot path).

    Casts the (d_model, vocab) weight to bf16 and pads the vocab axis up to a multiple
    of the vocab tile.  Padded columns get zero weight and a -1e30 bias so they never
    affect the logsumexp and are sliced off after the kernel.
    """
    D, V = w.shape
    tn_eff = min(tn, _round_up(V, 128))
    V_pad = _round_up(V, tn_eff)
    w_p = jnp.pad(w.astype(jnp.bfloat16), ((0, 0), (0, V_pad - V)))
    b_p = jnp.pad(b.astype(jnp.float32), (0, V_pad - V), constant_values=_NEG_BIG)
    return w_p, b_p.reshape(1, V_pad)


@functools.partial(jax.jit, static_argnames=("vocab_size", "tm", "tn"))
def projection_layer(x, w_padded, b_padded, *, vocab_size, tm=None, tn=512):
    """x: (B, S, d_model), w_padded: (d_model, V_pad) bf16, b_padded: (1, V_pad) f32
    (from prepare_projection_params) -> (B, S, vocab_size) f32 log-probs."""
    B, S, D = x.shape
    Dw, V_pad = w_padded.shape
    assert D == Dw
    V = vocab_size
    assert V <= V_pad

    M = B * S
    if tm is None:
        tm = _DEFAULT_TM
    tm_eff = min(tm, _round_up(M, 16))     # 16: bf16 sublane packing of the x tile
    M_pad = _round_up(M, tm_eff)
    ni = M_pad // tm_eff

    tn_eff = min(tn, V_pad)
    assert V_pad % tn_eff == 0 and tn_eff % 128 == 0, (V_pad, tn_eff)
    nj = V_pad // tn_eff

    x2d = x.reshape(M, D)
    if M_pad != M:
        x2d = jnp.pad(x2d, ((0, M_pad - M), (0, 0)))
    x_bf16 = x2d.astype(jnp.bfloat16)
    w_bf16 = w_padded.astype(jnp.bfloat16)   # no-op when already bf16 (prepared once)
    b_f32 = b_padded.astype(jnp.float32)

    cost1 = pl.CostEstimate(
        flops=2 * M_pad * D * V_pad,
        transcendentals=M_pad * V_pad,                    # exp over the logits
        bytes_accessed=(
            M_pad * D * 2                                 # x (resident over vocab axis)
            + ni * D * V_pad * 2                          # weight re-read per row tile
            + ni * V_pad * 4                              # bias re-read per row tile
            + M_pad * V_pad * 4                           # logits writeback
            + M_pad * 4                                   # lse writeback
        ),
    )

    logits, lse = pl.pallas_call(
        _proj_lse_kernel,
        out_shape=(
            jax.ShapeDtypeStruct((M_pad, V_pad), jnp.float32),
            jax.ShapeDtypeStruct((M_pad, 1), jnp.float32),
        ),
        grid_spec=pltpu.PrefetchScalarGridSpec(
            num_scalar_prefetch=0,
            grid=(ni, nj),
            in_specs=[
                pl.BlockSpec((tm_eff, D), lambda i, j: (i, 0)),   # x rows (resident over vocab)
                pl.BlockSpec((D, tn_eff), lambda i, j: (0, j)),   # streamed weight tile
                pl.BlockSpec((1, tn_eff), lambda i, j: (0, j)),   # streamed bias tile
            ],
            out_specs=[
                pl.BlockSpec((tm_eff, tn_eff), lambda i, j: (i, j)),  # vocab-tiled logits
                pl.BlockSpec((tm_eff, 1), lambda i, j: (i, 0)),       # per-row logsumexp
            ],
            scratch_shapes=[
                pltpu.VMEM((tm_eff, 1), jnp.float32),   # running max m
                pltpu.VMEM((tm_eff, 1), jnp.float32),   # running sum-exp l
            ],
        ),
        compiler_params=pltpu.CompilerParams(
            dimension_semantics=("parallel", "arbitrary"),
            vmem_limit_bytes=_VMEM_LIMIT,
        ),
        cost_estimate=cost1,
    )(x_bf16, w_bf16, b_f32)

    # Pass 2: normalize.  Pure elementwise / mem-bound; widen the vocab tile to amortize
    # per-step overhead while staying inside a conservative VMEM budget.
    tn2 = tn_eff
    for k in (8, 4, 2):
        cand = tn_eff * k
        if V_pad % cand == 0 and 4 * tm_eff * cand * 4 <= 32 * 1024 * 1024:
            tn2 = cand
            break

    cost2 = pl.CostEstimate(
        flops=M_pad * V_pad,
        transcendentals=0,
        bytes_accessed=2 * M_pad * V_pad * 4 + ni * (V_pad // tn2) * tm_eff * 4,
    )

    out = pl.pallas_call(
        _normalize_kernel,
        out_shape=jax.ShapeDtypeStruct((M_pad, V_pad), jnp.float32),
        grid_spec=pltpu.PrefetchScalarGridSpec(
            num_scalar_prefetch=0,
            grid=(ni, V_pad // tn2),
            in_specs=[
                pl.BlockSpec((tm_eff, tn2), lambda i, j: (i, j)),
                pl.BlockSpec((tm_eff, 1), lambda i, j: (i, 0)),
            ],
            out_specs=pl.BlockSpec((tm_eff, tn2), lambda i, j: (i, j)),
        ),
        compiler_params=pltpu.CompilerParams(
            dimension_semantics=("parallel", "parallel"),
            vmem_limit_bytes=_VMEM_LIMIT,
        ),
        cost_estimate=cost2,
    )(logits, lse)

    return out[:M, :V].reshape(B, S, V)


if __name__ == "__main__":
    # Small shapes consistent with the module: (batch, seq, d_model) -> (batch, seq, vocab).
    # V=500 (not a multiple of 128) deliberately exercises the vocab padding/masking path.
    B, S, D, V = 2, 8, 64, 500

    key = jax.random.PRNGKey(0)
    kx, kw, kb = jax.random.split(key, 3)

    x = jax.random.normal(kx, (B, S, D), dtype=jnp.float32)
    # nn.Linear(d_model, vocab_size)-style init; weight kept in (D, V) layout for the kernel.
    bound = 1.0 / (D ** 0.5)
    w = jax.random.uniform(kw, (D, V), minval=-bound, maxval=bound, dtype=jnp.float32)
    b = jax.random.uniform(kb, (V,), minval=-bound, maxval=bound, dtype=jnp.float32)

    # tn=128 so the small demo exercises the streamed-vocab / online-logsumexp path
    # (4 vocab steps, last one partially padded).  Weight prep is hoisted out of the call.
    tn = 128
    w_p, b_p = prepare_projection_params(w, b, tn=tn)

    out = projection_layer(x, w_p, b_p, vocab_size=V, tn=tn)
    out = jax.block_until_ready(out)

    # Reference with the same bf16 matmul inputs / f32 accumulation.
    ref_logits = (
        jnp.dot(
            x.reshape(-1, D).astype(jnp.bfloat16),
            w.astype(jnp.bfloat16),
            preferred_element_type=jnp.float32,
        )
        + b
    )
    ref = jax.nn.log_softmax(ref_logits, axis=-1).reshape(B, S, V)

    assert out.shape == (B, S, V)
    assert bool(jnp.allclose(out, ref, atol=2e-3, rtol=2e-3))

    print("KERNEL_OK")
</pallas_src>

<mosaic_0001>
module attributes {stable_mosaic.version = 11 : i64} {
  func.func @_proj_lse_kernel(%arg0: i32, %arg1: i32, %arg2: memref<16x64xbf16, #tpu.memory_space<vmem>>, %arg3: memref<64x128xbf16, #tpu.memory_space<vmem>>, %arg4: memref<1x128xf32, #tpu.memory_space<vmem>>, %arg5: memref<16x128xf32, #tpu.memory_space<vmem>>, %arg6: memref<16x1xf32, #tpu.memory_space<vmem>>, %arg7: memref<16x1xf32, #tpu.memory_space<vmem>>, %arg8: memref<16x1xf32, #tpu.memory_space<vmem>>) attributes {dimension_semantics = [#tpu.dimension_semantics<parallel>, #tpu.dimension_semantics<arbitrary>], iteration_bounds = array<i64: 1, 4>, scalar_prefetch = 0 : i64, scratch_operands = 2 : i64, tpu.core_type = #tpu.core_type<tc>, window_params = [{transform_indices = @transform_0, window_bounds = array<i64: 16, 64>}, {transform_indices = @transform_1, window_bounds = array<i64: 64, 128>}, {transform_indices = @transform_2, window_bounds = array<i64: 1, 128>}, {transform_indices = @transform_3, window_bounds = array<i64: 16, 128>}, {transform_indices = @transform_4, window_bounds = array<i64: 16, 1>}]} {
    %c0_i32 = arith.constant 0 : i32
    %0 = arith.cmpi eq, %arg1, %c0_i32 : i32
    %1 = arith.extui %0 : i1 to i32
    %c0_i32_0 = arith.constant 0 : i32
    %2 = arith.cmpi ne, %1, %c0_i32_0 : i32
    scf.if %2 {
      %cst_19 = arith.constant 0xFF800000 : f32
      %29 = vector.broadcast %cst_19 : f32 to vector<16x1xf32>
      %c0_20 = arith.constant 0 : index
      %c0_21 = arith.constant 0 : index
      %30 = vector.load %arg7[%c0_20, %c0_21] : memref<16x1xf32, #tpu.memory_space<vmem>>, vector<16x1xf32>
      tpu.vector_store %arg7[%c0_20, %c0_21], %29 {strides = array<i32>} : memref<16x1xf32, #tpu.memory_space<vmem>>, vector<16x1xf32>,
      %cst_22 = arith.constant 0.000000e+00 : f32
      %31 = vector.broadcast %cst_22 : f32 to vector<16x1xf32>
      %c0_23 = arith.constant 0 : index
      %c0_24 = arith.constant 0 : index
      %32 = vector.load %arg8[%c0_23, %c0_24] : memref<16x1xf32, #tpu.memory_space<vmem>>, vector<16x1xf32>
      tpu.vector_store %arg8[%c0_23, %c0_24], %31 {strides = array<i32>} : memref<16x1xf32, #tpu.memory_space<vmem>>, vector<16x1xf32>,
    } else {
    }
    %c0 = arith.constant 0 : index
    %c0_1 = arith.constant 0 : index
    %3 = vector.load %arg2[%c0, %c0_1] : memref<16x64xbf16, #tpu.memory_space<vmem>>, vector<16x64xbf16>
    %c0_2 = arith.constant 0 : index
    %c0_3 = arith.constant 0 : index
    %4 = vector.load %arg3[%c0_2, %c0_3] : memref<64x128xbf16, #tpu.memory_space<vmem>>, vector<64x128xbf16>
    %cst = arith.constant dense<0.000000e+00> : vector<16x128xf32>
    %5 = tpu.matmul %3, %4, %cst {dimension_numbers = #tpu.dot_dimension_numbers<[1], [0], [0], [1], [0, 0, 1, 1], [], []>} : vector<16x64xbf16>, vector<64x128xbf16>, vector<16x128xf32> -> vector<16x128xf32>
    %c0_4 = arith.constant 0 : index
    %c0_5 = arith.constant 0 : index
    %6 = vector.load %arg4[%c0_4, %c0_5] : memref<1x128xf32, #tpu.memory_space<vmem>>, vector<1x128xf32>
    %7 = vector.broadcast %6 : vector<1x128xf32> to vector<16x128xf32>
    %8 = arith.addf %5, %7 : vector<16x128xf32>
    %c0_6 = arith.constant 0 : index
    %c0_7 = arith.constant 0 : index
    %9 = vector.load %arg5[%c0_6, %c0_7] : memref<16x128xf32, #tpu.memory_space<vmem>>, vector<16x128xf32>
    tpu.vector_store %arg5[%c0_6, %c0_7], %8 {strides = array<i32>} : memref<16x128xf32, #tpu.memory_space<vmem>>, vector<16x128xf32>,
    %c0_8 = arith.constant 0 : index
    %c0_9 = arith.constant 0 : index
    %10 = vector.load %arg7[%c0_8, %c0_9] : memref<16x1xf32, #tpu.memory_space<vmem>>, vector<16x1xf32>
    %cst_10 = arith.constant dense<0xFF800000> : vector<16xf32>
    %11 = vector.multi_reduction <maximumf>, %8, %cst_10 [1] : vector<16x128xf32> to vector<16xf32>
    %12 = vector.shape_cast %11 : vector<16xf32> to vector<16x1xf32>
    %13 = arith.maximumf %10, %12 : vector<16x1xf32>
    %c0_11 = arith.constant 0 : index
    %c0_12 = arith.constant 0 : index
    %14 = vector.load %arg8[%c0_11, %c0_12] : memref<16x1xf32, #tpu.memory_space<vmem>>, vector<16x1xf32>
    %15 = arith.subf %10, %13 : vector<16x1xf32>
    %16 = math.exp %15 : vector<16x1xf32>
    %17 = arith.mulf %14, %16 : vector<16x1xf32>
    %18 = vector.broadcast %13 : vector<16x1xf32> to vector<16x128xf32>
    %19 = arith.subf %8, %18 : vector<16x128xf32>
    %20 = math.exp %19 : vector<16x128xf32>
    %cst_13 = arith.constant dense<0.000000e+00> : vector<16xf32>
    %21 = vector.multi_reduction <add>, %20, %cst_13 [1] : vector<16x128xf32> to vector<16xf32>
    %22 = vector.shape_cast %21 : vector<16xf32> to vector<16x1xf32>
    %23 = arith.addf %17, %22 : vector<16x1xf32>
    %c0_14 = arith.constant 0 : index
    %c0_15 = arith.constant 0 : index
    %24 = vector.load %arg8[%c0_14, %c0_15] : memref<16x1xf32, #tpu.memory_space<vmem>>, vector<16x1xf32>
    tpu.vector_store %arg8[%c0_14, %c0_15], %23 {strides = array<i32>} : memref<16x1xf32, #tpu.memory_space<vmem>>, vector<16x1xf32>,
    %c0_16 = arith.constant 0 : index
    %c0_17 = arith.constant 0 : index
    %25 = vector.load %arg7[%c0_16, %c0_17] : memref<16x1xf32, #tpu.memory_space<vmem>>, vector<16x1xf32>
    tpu.vector_store %arg7[%c0_16, %c0_17], %13 {strides = array<i32>} : memref<16x1xf32, #tpu.memory_space<vmem>>, vector<16x1xf32>,
    %c3_i32 = arith.constant 3 : i32
    %26 = arith.cmpi eq, %arg1, %c3_i32 : i32
    %27 = arith.extui %26 : i1 to i32
    %c0_i32_18 = arith.constant 0 : i32
    %28 = arith.cmpi ne, %27, %c0_i32_18 : i32
    scf.if %28 {
      %c0_19 = arith.constant 0 : index
      %c0_20 = arith.constant 0 : index
      %29 = vector.load %arg7[%c0_19, %c0_20] : memref<16x1xf32, #tpu.memory_space<vmem>>, vector<16x1xf32>
      %c0_21 = arith.constant 0 : index
      %c0_22 = arith.constant 0 : index
      %30 = vector.load %arg8[%c0_21, %c0_22] : memref<16x1xf32, #tpu.memory_space<vmem>>, vector<16x1xf32>
      %31 = math.log %30 : vector<16x1xf32>
      %32 = arith.addf %29, %31 : vector<16x1xf32>
      %c0_23 = arith.constant 0 : index
      %c0_24 = arith.constant 0 : index
      %33 = vector.load %arg6[%c0_23, %c0_24] : memref<16x1xf32, #tpu.memory_space<vmem>>, vector<16x1xf32>
      tpu.vector_store %arg6[%c0_23, %c0_24], %32 {strides = array<i32>} : memref<16x1xf32, #tpu.memory_space<vmem>>, vector<16x1xf32>,
    } else {
    }
    return
  }
  func.func @transform_0(%arg0: i32, %arg1: i32) -> (i32, i32) {
    %c0_i32 = arith.constant 0 : i32
    %c0_i32_0 = arith.constant 0 : i32
    return %arg0, %c0_i32 : i32, i32
  }
  func.func @transform_1(%arg0: i32, %arg1: i32) -> (i32, i32) {
    %c0_i32 = arith.constant 0 : i32
    %c0_i32_0 = arith.constant 0 : i32
    return %c0_i32, %arg1 : i32, i32
  }
  func.func @transform_2(%arg0: i32, %arg1: i32) -> (i32, i32) {
    %c0_i32 = arith.constant 0 : i32
    %c0_i32_0 = arith.constant 0 : i32
    return %c0_i32, %arg1 : i32, i32
  }
  func.func @transform_3(%arg0: i32, %arg1: i32) -> (i32, i32) {
    %c0_i32 = arith.constant 0 : i32
    return %arg0, %arg1 : i32, i32
  }
  func.func @transform_4(%arg0: i32, %arg1: i32) -> (i32, i32) {
    %c0_i32 = arith.constant 0 : i32
    %c0_i32_0 = arith.constant 0 : i32
    return %arg0, %c0_i32 : i32, i32
  }
}

module attributes {stable_mosaic.version = 11 : i64} {
  func.func @_normalize_kernel(%arg0: i32, %arg1: i32, %arg2: memref<16x512xf32, #tpu.memory_space<vmem>>, %arg3: memref<16x1xf32, #tpu.memory_space<vmem>>, %arg4: memref<16x512xf32, #tpu.memory_space<vmem>>) attributes {dimension_semantics = [#tpu.dimension_semantics<parallel>, #tpu.dimension_semantics<parallel>], iteration_bounds = array<i64: 1, 1>, scalar_prefetch = 0 : i64, scratch_operands = 0 : i64, tpu.core_type = #tpu.core_type<tc>, window_params = [{transform_indices = @transform_0, window_bounds = array<i64: 16, 512>}, {transform_indices = @transform_1, window_bounds = array<i64: 16, 1>}, {transform_indices = @transform_2, window_bounds = array<i64: 16, 512>}]} {
    %c0 = arith.constant 0 : index
    %c0_0 = arith.constant 0 : index
    %0 = vector.load %arg2[%c0, %c0_0] : memref<16x512xf32, #tpu.memory_space<vmem>>, vector<16x512xf32>
    %c0_1 = arith.constant 0 : index
    %c0_2 = arith.constant 0 : index
    %1 = vector.load %arg3[%c0_1, %c0_2] : memref<16x1xf32, #tpu.memory_space<vmem>>, vector<16x1xf32>
    %2 = vector.broadcast %1 : vector<16x1xf32> to vector<16x512xf32>
    %3 = arith.subf %0, %2 : vector<16x512xf32>
    %c0_3 = arith.constant 0 : index
    %c0_4 = arith.constant 0 : index
    %4 = vector.load %arg4[%c0_3, %c0_4] : memref<16x512xf32, #tpu.memory_space<vmem>>, vector<16x512xf32>
    tpu.vector_store %arg4[%c0_3, %c0_4], %3 {strides = array<i32>} : memref<16x512xf32, #tpu.memory_space<vmem>>, vector<16x512xf32>,
    return
  }
  func.func @transform_0(%arg0: i32, %arg1: i32) -> (i32, i32) {
    %c0_i32 = arith.constant 0 : i32
    return %arg0, %arg1 : i32, i32
  }
  func.func @transform_1(%arg0: i32, %arg1: i32) -> (i32, i32) {
    %c0_i32 = arith.constant 0 : i32
    %c0_i32_0 = arith.constant 0 : i32
    return %arg0, %c0_i32 : i32, i32
  }
  func.func @transform_2(%arg0: i32, %arg1: i32) -> (i32, i32) {
    %c0_i32 = arith.constant 0 : i32
    return %arg0, %arg1 : i32, i32
  }
}

</mosaic_0001>

<llo_original>
// kernel: projection_layer.3
$region0: #{projection_layer.3}
  #allocation0 [shape = 'u32[]', space=smem, size = 0x4, offset = 0x4, fixed_abs, tag = 'smem constant byte address 0x4 - core index']
  #allocation1 [shape = 'u32[144,128]{1,0:T(1,128)}', space=vmem, size = 0x12000, scoped, tag = 'internal scratch']
  %s0 = inlined_call_operand.hbm [shape: f32[16,512], index: 0, kind: input, shape index: {}]
  %s1 = inlined_call_operand.hbm [shape: f32[16,1], index: 1, kind: input, shape index: {}]
  %s2 = inlined_call_operand.hbm [shape: f32[16,512], index: 2, kind: output, shape index: {}]
  %s3 = sld [smem:[#allocation0]]
  $region26: #{projection_layer.3} parent=0
    _
  %s5 = ssub.s32 1, %s3
  %s6 = scalar_select 0, %s5, %s3
  $region1: #{projection_layer.3} parent=0
    #allocation2 [shape = 'u8[32768]{0}', space=vmem, size = 0x8000, scoped, tag = 'input window, operand 0, single buffered']
    #allocation3 [shape = 's32[1]{0}', space=sflag, size = 0x4, scoped, tag = 'scoped memory for projection_layer.3']
    #allocation4 [shape = 's32[1]{0}', space=sflag, size = 0x4, scoped, tag = 'scoped memory for projection_layer.3']
    #allocation5 [shape = 'u8[8192]{0}', space=vmem, size = 0x2000, scoped, tag = 'input window, operand 1, single buffered']
    #allocation6 [shape = 's32[1]{0}', space=sflag, size = 0x4, scoped, tag = 'scoped memory for projection_layer.3']
    #allocation7 [shape = 'u8[32768]{0}', space=vmem, size = 0x8000, scoped, tag = 'output window, operand 0, single buffered']
    %7 = vsyncpa [#allocation3], 0
    %8 = vsyncpa [#allocation6], 0
    %9 = vsyncpa [#allocation4], 0
    // Predicated region
    $region2: #{projection_layer.3} parent=1 // pred_check
      _
    $region3: #{projection_layer.3} parent=1 // pred_check_branch
      %11 = sbr.rel (0) target = $region5
    $region4: #{projection_layer.3} parent=1 // pred_region
      %s13 = ssub.s32 1024, 1024
      %14 = vsyncadd [#allocation3], %s13
      %s15 = sshll.u32 [#allocation2], 4
      %s16 = int_to_ptr.vmem [resolvable:$true] %s15
      %21 = dma.hbm_to_vmem [thread:$0]  %s0, 1024, %s16, [#allocation3], 512, 512, 32
    $region5: #{projection_layer.3} parent=1 // pred_fallthru
      _
    // Predicated region
    $region6: #{projection_layer.3} parent=1 // pred_check
      _
    $region7: #{projection_layer.3} parent=1 // pred_check_branch
      %23 = sbr.rel (0) target = $region9
    $region8: #{projection_layer.3} parent=1 // pred_region
      %s25 = ssub.s32 256, 256
      %26 = vsyncadd [#allocation6], %s25
      %s27 = sshll.u32 [#allocation5], 4
      %s28 = int_to_ptr.vmem [resolvable:$true] %s27
      %33 = dma.hbm_to_vmem [thread:$0]  %s1, 256, %s28, [#allocation6], 128, 128, 8
    $region9: #{projection_layer.3} parent=1 // pred_fallthru
      _
    // Predicated region
    $region10: #{projection_layer.3} parent=1 // pred_check
      _
    $region11: #{projection_layer.3} parent=1 // pred_check_branch
      %35 = sbr.rel (0) target = $region13
    $region12: #{projection_layer.3} parent=1 // pred_region
      %36 = dma.done [#allocation3], 1024
    $region13: #{projection_layer.3} parent=1 // pred_fallthru
      _
    // Predicated region
    $region14: #{projection_layer.3} parent=1 // pred_check
      _
    $region15: #{projection_layer.3} parent=1 // pred_check_branch
      %38 = sbr.rel (0) target = $region17
    $region16: #{projection_layer.3} parent=1 // pred_region
      %39 = dma.done [#allocation6], 256
    $region17: #{projection_layer.3} parent=1 // pred_fallthru
      _
    %v40 = vld [vmem:[#allocation2] sm:$0xff]
    %v41 = vld [vmem:[#allocation2 + $0x8] sm:$0xff]
    %v42 = vld [vmem:[#allocation2 + $0x10] sm:$0xff]
    %v43 = vld [vmem:[#allocation2 + $0x18] sm:$0xff]
    %v44 = vld [vmem:[#allocation2 + $0x20] sm:$0xff]
    %v45 = vld [vmem:[#allocation2 + $0x28] sm:$0xff]
    %v46 = vld [vmem:[#allocation2 + $0x30] sm:$0xff]
    %v47 = vld [vmem:[#allocation2 + $0x38] sm:$0xff]
    %v48 = vld [vmem:[#allocation5] sm:$0xff]
    %v49 = vld [vmem:[#allocation5 + $0x8] sm:$0xff]
    %51 = vset.pattern.permute.xlu0 0
    %52 = vperm.xlu0 %51, %v48
    %v53 = vpop.permute.xlu0 %52
    %56 = vset.pattern.permute.xlu0 0
    %57 = vperm.xlu0 %56, %v49
    %v58 = vpop.permute.xlu0 %57
    %v60 = vsub.f32 %v40, %v53
    %v61 = vsub.f32 %v41, %v53
    %v62 = vsub.f32 %v42, %v53
    %v63 = vsub.f32 %v43, %v53
    %v64 = vsub.f32 %v44, %v58
    %v65 = vsub.f32 %v45, %v58
    %v66 = vsub.f32 %v46, %v58
    %v67 = vsub.f32 %v47, %v58
    %68 = vst [vmem:[#allocation7] sm:$0xff] %v60
    %69 = vst [vmem:[#allocation7 + $0x8] sm:$0xff] %v61
    %70 = vst [vmem:[#allocation7 + $0x10] sm:$0xff] %v62
    %71 = vst [vmem:[#allocation7 + $0x18] sm:$0xff] %v63
    %72 = vst [vmem:[#allocation7 + $0x20] sm:$0xff] %v64
    %73 = vst [vmem:[#allocation7 + $0x28] sm:$0xff] %v65
    %74 = vst [vmem:[#allocation7 + $0x30] sm:$0xff] %v66
    %75 = vst [vmem:[#allocation7 + $0x38] sm:$0xff] %v67
    // Predicated region
    $region18: #{projection_layer.3} parent=1 // pred_check
      _
    $region19: #{projection_layer.3} parent=1 // pred_check_branch
      %77 = sbr.rel (0) target = $region21
    $region20: #{projection_layer.3} parent=1 // pred_region
      %s79 = ssub.s32 1024, 1024
      %80 = vsyncadd [#allocation4], %s79
      %s81 = sshll.u32 [#allocation7], 4
      %s82 = int_to_ptr.vmem [resolvable:$true] %s81
      %87 = dma.vmem_to_hbm [thread:$0]  %s82, 1024, %s2, [#allocation4], 512, 512, 32
    $region21: #{projection_layer.3} parent=1 // pred_fallthru
      _
    // Predicated region
    $region22: #{projection_layer.3} parent=1 // pred_check
      _
    $region23: #{projection_layer.3} parent=1 // pred_check_branch
      %89 = sbr.rel (0) target = $region25
    $region24: #{projection_layer.3} parent=1 // pred_region
      %90 = dma.done [#allocation4], 1024
    $region25: #{projection_layer.3} parent=1 // pred_fallthru
      _
    %91 = vsyncpa [#allocation3], 1
    %92 = vsyncpa [#allocation6], 1
    %93 = vsyncpa [#allocation4], 1

// kernel: projection_layer.2
$region0: #{projection_layer.2}
  #allocation0 [shape = 'u32[]', space=smem, size = 0x4, offset = 0x4, fixed_abs, tag = 'smem constant byte address 0x4 - core index']
  #allocation1 [shape = 'u32[144,128]{1,0:T(1,128)}', space=vmem, size = 0x12000, scoped, tag = 'internal scratch']
  #allocation2 [shape = 'f32[16,1]{1,0:T(8,128)}', space=vmem, size = 0x2000, scoped, tag = 'scratch operand']
  #allocation3 [shape = 'f32[16,1]{1,0:T(8,128)}', space=vmem, size = 0x2000, scoped, tag = 'scratch operand']
  %s0 = inlined_call_operand.hbm [shape: bf16[16,64], index: 0, kind: input, shape index: {}]
  %s1 = inlined_call_operand.hbm [shape: bf16[64,512], index: 1, kind: input, shape index: {}]
  %s2 = inlined_call_operand.hbm [shape: f32[1,512], index: 2, kind: input, shape index: {}]
  %s3 = inlined_call_operand.hbm [shape: f32[16,512], index: 3, kind: output, shape index: {0}]
  %s4 = inlined_call_operand.hbm [shape: f32[16,1], index: 4, kind: output, shape index: {1}]
  %5 = xla_tuple %s3, %s4
  %s6 = sld [smem:[#allocation0]]
  $region73: #{projection_layer.2} parent=0
    _
  %s8 = ssub.s32 1, %s6
  %s9 = scalar_select 0, %s8, %s6
  $region1: #{projection_layer.2} parent=0
    #allocation4 [shape = 'u8[4096]{0}', space=vmem, size = 0x1000, scoped, tag = 'input window, operand 0, single buffered']
    #allocation5 [shape = 's32[2]{0}', space=sflag, size = 0x8, scoped, tag = 'scoped memory for projection_layer.2']
    #allocation6 [shape = 's32[2]{0}', space=sflag, size = 0x8, scoped, tag = 'scoped memory for projection_layer.2']
    #allocation7 [shape = 'u8[32768]{0}', space=vmem, size = 0x8000, scoped, tag = 'input window, operand 1']
    #allocation8 [shape = 's32[2]{0}', space=sflag, size = 0x8, scoped, tag = 'scoped memory for projection_layer.2']
    #allocation9 [shape = 'u8[1024]{0}', space=vmem, size = 0x400, scoped, tag = 'input window, operand 2']
    #allocation10 [shape = 'u8[16384]{0}', space=vmem, size = 0x4000, scoped, tag = 'output window, operand 0']
    #allocation11 [shape = 'u8[8192]{0}', space=vmem, size = 0x2000, scoped, tag = 'output window, operand 1, single buffered']
    #allocation12 [shape = 's32[1]{0}', space=sflag, size = 0x4, scoped, tag = 'scoped memory for projection_layer.2']
    %10 = vsyncpa [#allocation5], 0
    %11 = vsyncpa [#allocation8], 0
    %s12 = scalar_lea.sflag [#allocation8], 1
    %13 = vsyncpa %s12, 0
    %14 = vsyncpa [#allocation6], 0
    %s15 = scalar_lea.sflag [#allocation6], 1
    %16 = vsyncpa %s15, 0
    %17 = vsyncpa [#allocation12], 0
    loop: start=0, step=1, limit=6
    $region2: #{projection_layer.2} parent=1 // loop_pre_header
      _
    $region3: #{projection_layer.2} parent=1 // loop_header
      %s19 = sphi 0, %s23
      %p20 = scmp.ge.s32.totalorder %s19, 6
      %s26 = sphi 0, %s38
      %s27 = sphi 0, %s34
      %s28 = sphi 0, %s26
      %s29 = sphi 0, %s27
      %s30 = sphi 0, %s28
      %s31 = sphi 0, %s29
      %s41 = sphi 0, %s43
      %s44 = sphi 0, %s41
      %s45 = sphi 0, %s44
      %s61 = sphi 0, %s45
      %s67 = sphi 0, %s69
      %s70 = sphi 0, %s67
      %s71 = sphi 0, %s70
      %s87 = sphi 0, %s71
      %s93 = sphi 0, %s95
      %s96 = sphi 0, %s93
      %s97 = sphi 0, %s96
      %s113 = sphi 0, %s97
      %s121 = sphi 0, %s123
      %s124 = sphi 0, %s121
      %s125 = sphi 0, %s124
      %s141 = sphi 0, %s125
      %s147 = sphi 0, %s149
      %s150 = sphi 0, %s147
      %s151 = sphi 0, %s150
      %s167 = sphi 0, %s151
    $region4: #{projection_layer.2} parent=1 // loop_header_branch
      %22 = sbr.rel (%p20) target = $region8
    $region5: #{projection_layer.2} parent=1 // loop_body
      %s24 = ssub.s32 %s19, 1
      %s25 = ssub.s32 %s19, 2
      %s32 = sadd.s32 1, %s27
      %p33 = scmp.ge.s32.totalorder %s32, 4
      %s34 = scalar_select %p33, 0, %s32
      %s35 = sadd.s32 1, %s26
      %s36 = scalar_select %p33, %s35, %s26
      %p37 = scmp.ge.s32.totalorder %s36, 1
      %s38 = scalar_select %p37, 0, %s36
      %s39 = ssub.s32 %s26, %s38
      %p40 = scmp.eq.s32.totalorder %s39, 0
      %s42 = sadd.s32 %s41, 1
      %s43 = scalar_select %p40, %s41, %s42
      %p46 = pneg %p40
      %p47 = scmp.eq.s32.totalorder %s19, 3
      %p48 = por %p46, %p47
      %p49 = scmp.ne.s32.totalorder %s41, %s44
      %p50 = scmp.eq.s32.totalorder %s19, 0
      %p51 = por %p49, %p50
      %p52 = scmp.ne.s32.totalorder %s41, %s44
      %p53 = scmp.eq.s32.totalorder %s24, 3
      %p54 = por %p52, %p53
      %p55 = scmp.ne.s32.totalorder %s44, %s45
      %p56 = scmp.eq.s32.totalorder %s24, 0
      %p57 = por %p55, %p56
      %p58 = scmp.ne.s32.totalorder %s44, %s45
      %p59 = scmp.eq.s32.totalorder %s25, 3
      %p60 = por %p58, %p59
      %p62 = scmp.ne.s32.totalorder %s45, %s61
      %p63 = scmp.eq.s32.totalorder %s25, 0
      %p64 = por %p62, %p63
      %s65 = ssub.s32 %s27, %s34
      %p66 = scmp.eq.s32.totalorder %s65, 0
      %s68 = sadd.s32 %s67, 1
      %s69 = scalar_select %p66, %s67, %s68
      %p72 = pneg %p66
      %p73 = scmp.eq.s32.totalorder %s19, 3
      %p74 = por %p72, %p73
      %p75 = scmp.ne.s32.totalorder %s67, %s70
      %p76 = scmp.eq.s32.totalorder %s19, 0
      %p77 = por %p75, %p76
      %p78 = scmp.ne.s32.totalorder %s67, %s70
      %p79 = scmp.eq.s32.totalorder %s24, 3
      %p80 = por %p78, %p79
      %p81 = scmp.ne.s32.totalorder %s70, %s71
      %p82 = scmp.eq.s32.totalorder %s24, 0
      %p83 = por %p81, %p82
      %p84 = scmp.ne.s32.totalorder %s70, %s71
      %p85 = scmp.eq.s32.totalorder %s25, 3
      %p86 = por %p84, %p85
      %p88 = scmp.ne.s32.totalorder %s71, %s87
      %p89 = scmp.eq.s32.totalorder %s25, 0
      %p90 = por %p88, %p89
      %s91 = ssub.s32 %s27, %s34
      %p92 = scmp.eq.s32.totalorder %s91, 0
      %s94 = sadd.s32 %s93, 1
      %s95 = scalar_select %p92, %s93, %s94
      %p98 = pneg %p92
      %p99 = scmp.eq.s32.totalorder %s19, 3
      %p100 = por %p98, %p99
      %p101 = scmp.ne.s32.totalorder %s93, %s96
      %p102 = scmp.eq.s32.totalorder %s19, 0
      %p103 = por %p101, %p102
      %p104 = scmp.ne.s32.totalorder %s93, %s96
      %p105 = scmp.eq.s32.totalorder %s24, 3
      %p106 = por %p104, %p105
      %p107 = scmp.ne.s32.totalorder %s96, %s97
      %p108 = scmp.eq.s32.totalorder %s24, 0
      %p109 = por %p107, %p108
      %p110 = scmp.ne.s32.totalorder %s96, %s97
      %p111 = scmp.eq.s32.totalorder %s25, 3
      %p112 = por %p110, %p111
      %p114 = scmp.ne.s32.totalorder %s97, %s113
      %p115 = scmp.eq.s32.totalorder %s25, 0
      %p116 = por %p114, %p115
      %s117 = ssub.s32 %s26, %s38
      %s118 = ssub.s32 %s27, %s34
      %s119 = sor.u32 %s117, %s118
      %p120 = scmp.eq.s32.totalorder %s119, 0
      %s122 = sadd.s32 %s121, 1
      %s123 = scalar_select %p120, %s121, %s122
      %p126 = pneg %p120
      %p127 = scmp.eq.s32.totalorder %s19, 3
      %p128 = por %p126, %p127
      %p129 = scmp.ne.s32.totalorder %s121, %s124
      %p130 = scmp.eq.s32.totalorder %s19, 0
      %p131 = por %p129, %p130
      %p132 = scmp.ne.s32.totalorder %s121, %s124
      %p133 = scmp.eq.s32.totalorder %s24, 3
      %p134 = por %p132, %p133
      %p135 = scmp.ne.s32.totalorder %s124, %s125
      %p136 = scmp.eq.s32.totalorder %s24, 0
      %p137 = por %p135, %p136
      %p138 = scmp.ne.s32.totalorder %s124, %s125
      %p139 = scmp.eq.s32.totalorder %s25, 3
      %p140 = por %p138, %p139
      %p142 = scmp.ne.s32.totalorder %s125, %s141
      %p143 = scmp.eq.s32.totalorder %s25, 0
      %p144 = por %p142, %p143
      %s145 = ssub.s32 %s26, %s38
      %p146 = scmp.eq.s32.totalorder %s145, 0
      %s148 = sadd.s32 %s147, 1
      %s149 = scalar_select %p146, %s147, %s148
      %p152 = pneg %p146
      %p153 = scmp.eq.s32.totalorder %s19, 3
      %p154 = por %p152, %p153
      %p155 = scmp.ne.s32.totalorder %s147, %s150
      %p156 = scmp.eq.s32.totalorder %s19, 0
      %p157 = por %p155, %p156
      %p158 = scmp.ne.s32.totalorder %s147, %s150
      %p159 = scmp.eq.s32.totalorder %s24, 3
      %p160 = por %p158, %p159
      %p161 = scmp.ne.s32.totalorder %s150, %s151
      %p162 = scmp.eq.s32.totalorder %s24, 0
      %p163 = por %p161, %p162
      %p164 = scmp.ne.s32.totalorder %s150, %s151
      %p165 = scmp.eq.s32.totalorder %s25, 3
      %p166 = por %p164, %p165
      %p168 = scmp.ne.s32.totalorder %s151, %s167
      %p169 = scmp.eq.s32.totalorder %s25, 0
      %p170 = por %p168, %p169
      %p171 = scmp.le.s32.totalorder 1, %s19
      %p172 = scmp.lt.s32.totalorder %s19, 5
      %p173 = pnand %p171, %p172
      %p174 = pneg %p173
      // Predicated region
      $region9: #{projection_layer.2} parent=5 // pred_check
        _
      $region10: #{projection_layer.2} parent=5 // pred_check_branch
        %176 = sbr.rel (%p173) target = $region12
      $region11: #{projection_layer.2} parent=5 // pred_region
        %s177 = ssub.s32 %s19, 1
        // Predicated region
        $region13: #{projection_layer.2} parent=11 // pred_check
          %p178 = pneg %p57
        $region14: #{projection_layer.2} parent=11 // pred_check_branch
          %180 = sbr.rel (%p178) target = $region16
        $region15: #{projection_layer.2} parent=11 // pred_region
          %s181 = smul.u32 2, %s28
          %s183 = ssub.s32 128, 128
          %184 = vsyncadd [#allocation5], %s183
          %s185 = smul.addr %s181, 64
          %s186 = scalar_lea.hbm %s0, %s185
          %s187 = sshll.u32 [#allocation4], 4
          %s188 = int_to_ptr.vmem [resolvable:$true] %s187
          %193 = dma.hbm_to_vmem [thread:$0]  %s186, 128, %s188, [#allocation5], 64, 64, 4
        $region16: #{projection_layer.2} parent=11 // pred_fallthru
          _
      $region12: #{projection_layer.2} parent=5 // pred_fallthru
        _
      %p194 = scmp.lt.s32.totalorder %s19, 4
      // Predicated region
      $region17: #{projection_layer.2} parent=5 // pred_check
        %p195 = pneg %p194
      $region18: #{projection_layer.2} parent=5 // pred_check_branch
        %197 = sbr.rel (%p195) target = $region20
      $region19: #{projection_layer.2} parent=5 // pred_region
        // Predicated region
        $region21: #{projection_layer.2} parent=19 // pred_check
          %p198 = pneg %p77
        $region22: #{projection_layer.2} parent=19 // pred_check_branch
          %200 = sbr.rel (%p198) target = $region24
        $region23: #{projection_layer.2} parent=19 // pred_region
          %s201 = sand.u32 %s19, 1
          %s202 = scalar_lea.sflag [#allocation8], %s201
          %s203 = sand.u32 %s67, 1
          %s204 = smul.addr %s203, 32
          %s205 = scalar_lea.vmem [#allocation7], %s204
          %s207 = ssub.s32 512, 512
          %208 = vsyncadd %s202, %s207
          %s209 = smul.addr %s27, 64
          %s210 = scalar_lea.hbm %s1, %s209
          %s211 = sshll.u32 %s205, 4
          %s212 = int_to_ptr.vmem [resolvable:$true] %s211
          %217 = dma.hbm_to_vmem [thread:$0]  %s210, 512, %s212, %s202, 256, 64, 4
        $region24: #{projection_layer.2} parent=19 // pred_fallthru
          _
        // Predicated region
        $region25: #{projection_layer.2} parent=19 // pred_check
          %p218 = pneg %p103
        $region26: #{projection_layer.2} parent=19 // pred_check_branch
          %220 = sbr.rel (%p218) target = $region28
        $region27: #{projection_layer.2} parent=19 // pred_region
          %s221 = sand.u32 %s19, 1
          %s222 = scalar_lea.sflag [#allocation8], %s221
          %s223 = sand.u32 %s93, 1
          %s224 = scalar_lea.vmem [#allocation9], %s223
          %s226 = ssub.s32 16, 16
          %227 = vsyncadd %s222, %s226
          %s228 = smul.addr %s27, 16
          %s229 = scalar_lea.hbm %s2, %s228
          %s231 = sshll.u32 %s224, 4
          %s232 = int_to_ptr.vmem [resolvable:$true] %s231
          %234 = dma.hbm_to_vmem [thread:$0]  %s229, 16, %s232, %s222
        $region28: #{projection_layer.2} parent=19 // pred_fallthru
          _
      $region20: #{projection_layer.2} parent=5 // pred_fallthru
        _
      %p235 = scmp.le.s32.totalorder 1, %s19
      %p236 = scmp.lt.s32.totalorder %s19, 5
      %p237 = pnand %p235, %p236
      %p238 = pneg %p237
      // Predicated region
      $region29: #{projection_layer.2} parent=5 // pred_check
        _
      $region30: #{projection_layer.2} parent=5 // pred_check_branch
        %240 = sbr.rel (%p237) target = $region32
      $region31: #{projection_layer.2} parent=5 // pred_region
        %s241 = ssub.s32 %s19, 1
        // Predicated region
        $region33: #{projection_layer.2} parent=31 // pred_check
          %p242 = pneg %p57
        $region34: #{projection_layer.2} parent=31 // pred_check_branch
          %244 = sbr.rel (%p242) target = $region36
        $region35: #{projection_layer.2} parent=31 // pred_region
          %245 = dma.done [#allocation5], 128
        $region36: #{projection_layer.2} parent=31 // pred_fallthru
          _
        %s246 = sand.u32 %s24, 1
        %s247 = scalar_lea.sflag [#allocation8], %s246
        %s248 = sand.u32 %s70, 1
        %s249 = smul.addr %s248, 32
        %s250 = scalar_lea.vmem [#allocation7], %s249
        // Predicated region
        $region37: #{projection_layer.2} parent=31 // pred_check
          %p251 = pneg %p83
        $region38: #{projection_layer.2} parent=31 // pred_check_branch
          %253 = sbr.rel (%p251) target = $region40
        $region39: #{projection_layer.2} parent=31 // pred_region
          %254 = dma.done %s247, 512
        $region40: #{projection_layer.2} parent=31 // pred_fallthru
          _
        %s255 = sand.u32 %s24, 1
        %s256 = scalar_lea.sflag [#allocation8], %s255
        %s257 = sand.u32 %s96, 1
        %s258 = scalar_lea.vmem [#allocation9], %s257
        // Predicated region
        $region41: #{projection_layer.2} parent=31 // pred_check
          %p259 = pneg %p109
        $region42: #{projection_layer.2} parent=31 // pred_check_branch
          %261 = sbr.rel (%p259) target = $region44
        $region43: #{projection_layer.2} parent=31 // pred_region
          %262 = dma.done %s256, 16
        $region44: #{projection_layer.2} parent=31 // pred_fallthru
          _
        %p263 = pneg %p57
        %p264 = pneg %p54
        %s265 = sand.u32 %s24, 1
        %s266 = scalar_lea.sflag [#allocation8], %s265
        %s267 = sand.u32 %s70, 1
        %s268 = smul.addr %s267, 32
        %s269 = scalar_lea.vmem [#allocation7], %s268
        %p270 = pneg %p83
        %p271 = pneg %p80
        %s272 = sand.u32 %s24, 1
        %s273 = scalar_lea.sflag [#allocation8], %s272
        %s274 = sand.u32 %s96, 1
        %s275 = scalar_lea.vmem [#allocation9], %s274
        %p276 = pneg %p109
        %p277 = pneg %p106
        %p278 = pneg %p137
        %p279 = pneg %p134
        %s280 = sand.u32 %s124, 1
        %s281 = scalar_lea.sflag [#allocation6], %s280
        %s282 = sand.u32 %s124, 1
        %s283 = smul.addr %s282, 16
        %s284 = scalar_lea.vmem [#allocation10], %s283
        %p285 = pneg %p163
        %p286 = pneg %p160
        %s287 = smul.u32 2, %s28
        %s288 = smul.u32 2, %s28
        %s289 = smul.u32 2, %s28
        %p291 = scmp.eq.s32.totalorder %s29, 0
        // Predicated region
        $region45: #{projection_layer.2} parent=31 // pred_check
          %p292 = pneg %p291
        $region46: #{projection_layer.2} parent=31 // pred_check_branch
          %294 = sbr.rel (%p292) target = $region48
        $region47: #{projection_layer.2} parent=31 // pred_region
          %vm295 = vcmask 7168
          %296 = vst.msk [vmem:[#allocation2] sm:$0xff] %vm295, -inf
          %297 = vst.msk [vmem:[#allocation2 + $0x8] sm:$0xff] %vm295, -inf
          %298 = vst.msk [vmem:[#allocation3] sm:$0xff] %vm295, 0.0
          %299 = vst.msk [vmem:[#allocation3 + $0x8] sm:$0xff] %vm295, 0.0
        $region48: #{projection_layer.2} parent=31 // pred_fallthru
          _
        %v300 = vld [vmem:[#allocation4] sm:$0xf]
        %v301 = vld [vmem:[#allocation4 + $0x4] sm:$0xf]
        %v302 = vld [vmem:[%s250] sm:$0xf]
        %v303 = vld [vmem:[%s250 + $0x4] sm:$0xf]
        %v304 = vld [vmem:[%s250 + $0x8] sm:$0xf]
        %v305 = vld [vmem:[%s250 + $0xc] sm:$0xf]
        %v306 = vld [vmem:[%s250 + $0x10] sm:$0xf]
        %v307 = vld [vmem:[%s250 + $0x14] sm:$0xf]
        %v308 = vld [vmem:[%s250 + $0x18] sm:$0xf]
        %v309 = vld [vmem:[%s250 + $0x1c] sm:$0xf]
        %v310 = vld [vmem:[%s258] sm:$0x1]
        %v312 = vlaneseq
        %v313 = vshrl.u32 %v312, 7
        %v314 = vsub.s32 0, %v313
        %v315 = vrot.slane %v310, %v314
        %v319 = vunpack.c.l.b16 %v300
        %v320 = vunpack.c.l.b16 %v301
        %v321 = vpack.c.b16 %v320, %v319
        %v330 = vunpack.c.l.b16 %v302
        %v331 = vunpack.c.l.b16 %v303
        %v332 = vunpack.c.l.b16 %v304
        %v333 = vunpack.c.l.b16 %v305
        %v334 = vunpack.c.l.b16 %v306
        %v335 = vunpack.c.l.b16 %v307
        %v336 = vunpack.c.l.b16 %v308
        %v337 = vunpack.c.l.b16 %v309
        %v338 = vpack.c.b16 %v331, %v330
        %v339 = vpack.c.b16 %v333, %v332
        %v340 = vpack.c.b16 %v335, %v334
        %v341 = vpack.c.b16 %v337, %v336
        %vm346 = vcmask 523264
        %v348 = vsel %vm346, %v321, 0
        %350 = vmatprep.subr.bf16.mxu0 0
        %351 = vmatpush1.bf16.msra.mxu0 %v338
        %352 = vmatprep.subr.bf16.mxu0 0
        %353 = vmatpush1.bf16.msra.mxu0 %v339
        %354 = vmatprep.subr.bf16.mxu0 0
        %355 = vmatpush1.bf16.msra.mxu0 %v340
        %356 = vmatprep.subr.bf16.mxu0 0
        %357 = vmatpush1.bf16.msra.mxu0 %v341
        %358 = vmatprep.subr.bf16.mxu0 0
        %359 = vmatpush1.bf16.msra.mxu0 0
        %360 = vmatprep.subr.bf16.mxu0 0
        %361 = vmatpush1.bf16.msra.mxu0 0
        %362 = vmatprep.subr.bf16.mxu0 0
        %363 = vmatpush1.bf16.msra.mxu0 0
        %364 = vmatprep.subr.bf16.mxu0 0
        %365 = vmatpush1.bf16.msra.mxu0 0
        %366 = vmatprep.subr.bf16.mxu0 0
        %367 = vmatpush1.bf16.msra.mxu0 0
        %368 = vmatprep.subr.bf16.mxu0 0
        %369 = vmatpush1.bf16.msra.mxu0 0
        %370 = vmatprep.subr.bf16.mxu0 0
        %371 = vmatpush1.bf16.msra.mxu0 0
        %372 = vmatprep.subr.bf16.mxu0 0
        %373 = vmatpush1.bf16.msra.mxu0 0
        %374 = vmatprep.subr.bf16.mxu0 0
        %375 = vmatpush1.bf16.msra.mxu0 0
        %376 = vmatprep.subr.bf16.mxu0 0
        %377 = vmatpush1.bf16.msra.mxu0 0
        %378 = vmatprep.subr.bf16.mxu0 0
        %379 = vmatpush1.bf16.msra.mxu0 0
        %380 = vmatprep.subr.bf16.mxu0 0
        %381 = vmatpush1.bf16.msra.mxu0 0
        %382 = vmatprep.mubr.bf16.mxu0 0
        %383 = vmatmul.mubr.bf16.gmra.mrb[0].mxu0 %v348
        %v384 = vpop.f32.mrb[0].mxu0
        %v385 = vadd.f32 %v315, %v384
        %v386 = vpop.f32.mrb[0].mxu0
        %v387 = vpop.f32.mrb[0].mxu0
        %v388 = vadd.f32 %v315, %v387
        %v389 = vpop.f32.mrb[0].mxu0
        %390 = vdwg.mxu0
        %391 = vst [vmem:[%s284] sm:$0xff] %v385
        %392 = vst [vmem:[%s284 + $0x8] sm:$0xff] %v388
        %v393 = vld [vmem:[#allocation2] sm:$0xff]
        %v394 = vld [vmem:[#allocation2 + $0x8] sm:$0xff]
        %395 = vmax.xlane.f32.xlu0 %v385
        %v396 = vpop.xlane.xlu0 %395
        %397 = vmax.xlane.f32.xlu0 %v388
        %v398 = vpop.xlane.xlu0 %397
        %v399 = vmax.f32 %v393, %v396
        %v400 = vmax.f32 %v394, %v398
        %v401 = vld [vmem:[#allocation3] sm:$0xff]
        %v402 = vld [vmem:[#allocation3 + $0x8] sm:$0xff]
        %v403 = vsub.f32 %v393, %v399
        %v404 = vsub.f32 %v394, %v400
        %v405 = vmul.f32 %v403, 1.442695
        %v406 = vpow.pop %v405
        %v407 = vmul.f32 %v404, 1.442695
        %v408 = vpow.pop %v407
        %v409 = vmul.f32 %v401, %v406
        %v410 = vmul.f32 %v402, %v408
        %412 = vset.pattern.permute.xlu0 0
        %413 = vperm.xlu0 %412, %v399
        %v414 = vpop.permute.xlu0 %413
        %417 = vset.pattern.permute.xlu0 0
        %418 = vperm.xlu0 %417, %v400
        %v419 = vpop.permute.xlu0 %418
        %v421 = vsub.f32 %v385, %v414
        %v422 = vsub.f32 %v388, %v419
        %v423 = vmul.f32 %v421, 1.442695
        %v424 = vpow.pop %v423
        %v425 = vmul.f32 %v422, 1.442695
        %v426 = vpow.pop %v425
        %427 = vadd.xlane.f32.xlu0 %v424
        %v428 = vpop.xlane.xlu0 %427
        %429 = vadd.xlane.f32.xlu0 %v426
        %v430 = vpop.xlane.xlu0 %429
        %v431 = vadd.f32 %v409, %v428
        %v432 = vadd.f32 %v410, %v430
        %vm433 = vcmask 7168
        %434 = vst.msk [vmem:[#allocation3] sm:$0xff] %vm433, %v431
        %435 = vst.msk [vmem:[#allocation3 + $0x8] sm:$0xff] %vm433, %v432
        %436 = vst.msk [vmem:[#allocation2] sm:$0xff] %vm433, %v399
        %437 = vst.msk [vmem:[#allocation2 + $0x8] sm:$0xff] %vm433, %v400
        %p438 = scmp.eq.s32.totalorder %s29, 3
        // Predicated region
        $region49: #{projection_layer.2} parent=31 // pred_check
          %p439 = pneg %p438
        $region50: #{projection_layer.2} parent=31 // pred_check_branch
          %441 = sbr.rel (%p439) target = $region52
        $region51: #{projection_layer.2} parent=31 // pred_region
          %v442 = vld [vmem:[#allocation2] sm:$0xff]
          %v443 = vld [vmem:[#allocation2 + $0x8] sm:$0xff]
          %v444 = vld [vmem:[#allocation3] sm:$0xff]
          %v445 = vld [vmem:[#allocation3 + $0x8] sm:$0xff]
          %v446 = vlog2.pop %v444
          %v447 = vmul.f32 %v446, 0.6931472
          %v448 = vlog2.pop %v445
          %v449 = vmul.f32 %v448, 0.6931472
          %v450 = vadd.f32 %v442, %v447
          %v451 = vadd.f32 %v443, %v449
          %452 = vst.msk [vmem:[#allocation11] sm:$0xff] %vm433, %v450
          %453 = vst.msk [vmem:[#allocation11 + $0x8] sm:$0xff] %vm433, %v451
        $region52: #{projection_layer.2} parent=31 // pred_fallthru
          _
        %s454 = sand.u32 %s124, 1
        %s455 = scalar_lea.sflag [#allocation6], %s454
        %s456 = sand.u32 %s124, 1
        %s457 = smul.addr %s456, 16
        %s458 = scalar_lea.vmem [#allocation10], %s457
        // Predicated region
        $region53: #{projection_layer.2} parent=31 // pred_check
          %p459 = pneg %p134
        $region54: #{projection_layer.2} parent=31 // pred_check_branch
          %461 = sbr.rel (%p459) target = $region56
        $region55: #{projection_layer.2} parent=31 // pred_region
          %s462 = smul.u32 2, %s28
          %s464 = ssub.s32 256, 256
          %465 = vsyncadd %s455, %s464
          %s466 = smul.addr %s462, 4
          %s467 = sadd.s32 %s29, %s466
          %s468 = smul.addr %s467, 128
          %s469 = scalar_lea.hbm %s3, %s468
          %s470 = sshll.u32 %s458, 4
          %s471 = int_to_ptr.vmem [resolvable:$true] %s470
          %476 = dma.vmem_to_hbm [thread:$0]  %s471, 256, %s469, %s455, 128, 512, 8
        $region56: #{projection_layer.2} parent=31 // pred_fallthru
          _
        // Predicated region
        $region57: #{projection_layer.2} parent=31 // pred_check
          %p477 = pneg %p160
        $region58: #{projection_layer.2} parent=31 // pred_check_branch
          %479 = sbr.rel (%p477) target = $region60
        $region59: #{projection_layer.2} parent=31 // pred_region
          %s480 = smul.u32 2, %s28
          %s482 = ssub.s32 256, 256
          %483 = vsyncadd [#allocation12], %s482
          %s484 = smul.addr %s480, 128
          %s485 = scalar_lea.hbm %s4, %s484
          %s486 = sshll.u32 [#allocation11], 4
          %s487 = int_to_ptr.vmem [resolvable:$true] %s486
          %492 = dma.vmem_to_hbm [thread:$0]  %s487, 256, %s485, [#allocation12], 128, 128, 8
        $region60: #{projection_layer.2} parent=31 // pred_fallthru
          _
        // Predicated region
        $region61: #{projection_layer.2} parent=31 // pred_check
          %p493 = pneg %p160
        $region62: #{projection_layer.2} parent=31 // pred_check_branch
          %495 = sbr.rel (%p493) target = $region64
        $region63: #{projection_layer.2} parent=31 // pred_region
          %496 = dma.done [#allocation12], 256
        $region64: #{projection_layer.2} parent=31 // pred_fallthru
          _
      $region32: #{projection_layer.2} parent=5 // pred_fallthru
        _
      %p497 = scmp.le.s32.totalorder 2, %s19
      // Predicated region
      $region65: #{projection_layer.2} parent=5 // pred_check
        %p498 = pneg %p497
      $region66: #{projection_layer.2} parent=5 // pred_check_branch
        %500 = sbr.rel (%p498) target = $region68
      $region67: #{projection_layer.2} parent=5 // pred_region
        %s501 = ssub.s32 %s19, 2
        // Predicated region
        $region69: #{projection_layer.2} parent=67 // pred_check
          %p502 = pneg %p140
        $region70: #{projection_layer.2} parent=67 // pred_check_branch
          %504 = sbr.rel (%p502) target = $region72
        $region71: #{projection_layer.2} parent=67 // pred_region
          %s505 = sand.u32 %s125, 1
          %s506 = scalar_lea.sflag [#allocation6], %s505
          %s507 = sand.u32 %s125, 1
          %s508 = smul.addr %s507, 16
          %s509 = scalar_lea.vmem [#allocation10], %s508
          %510 = dma.done %s506, 256
        $region72: #{projection_layer.2} parent=67 // pred_fallthru
          _
      $region68: #{projection_layer.2} parent=5 // pred_fallthru
        _
    $region6: #{projection_layer.2} parent=1 // loop_footer
      %s23 = sadd.s32 1, %s19
    $region7: #{projection_layer.2} parent=1 // loop_footer_branch
      %18 = sbr.rel target = $region3
    $region8: #{projection_layer.2} parent=1 // loop_exit
      _
    %511 = vsyncpa [#allocation5], 1
    %s512 = scalar_lea.sflag [#allocation5], 1
    %513 = vsyncpa %s512, 1
    %514 = vsyncpa [#allocation8], 1
    %s515 = scalar_lea.sflag [#allocation8], 1
    %516 = vsyncpa %s515, 1
    %517 = vsyncpa [#allocation6], 1
    %s518 = scalar_lea.sflag [#allocation6], 1
    %519 = vsyncpa %s518, 1
    %520 = vsyncpa [#allocation12], 1

</llo_original>
